<compile_context>
chip_gen: v7x
topology: tpu7x:2x2x1
jax: 0.10.0
libtpu: 0.0.40
codegen_flags: <defaults>
</compile_context>

<pallas_src>
import functools

import jax
import jax.numpy as jnp
from jax.experimental import pallas as pl
from jax.experimental.pallas import tpu as pltpu


def _round_up(x, m):
    return ((x + m - 1) // m) * m


def _patch_embed_kernel(x_ref, w_ref, b_ref, o_ref):
    # x_ref: (tm, K) bf16   w_ref: (K, tn) bf16   b_ref: (1, tn) f32
    # o_ref: (tm, tn) out dtype.  f32 MXU accumulation, bias on the f32 acc.
    acc = jnp.dot(x_ref[...], w_ref[...], preferred_element_type=jnp.float32)
    o_ref[...] = (acc + b_ref[...]).astype(o_ref.dtype)


_VMEM_BUDGET = 24 * 1024 * 1024      # per-step double-buffered working set
_VMEM_LIMIT = 32 * 1024 * 1024       # > v5e default (16 MiB), == v6e/v7x
                                     # defaults, < v7x physical (64 MiB)
_RESIDENT_W_MAX = 8 * 1024 * 1024    # max double-buffered resident weight


def _select_tiles(M_pad, K, E_pad, out_itemsize):
    """Pick (tm, tn, weight_resident) under the VMEM budget."""
    resident_w_bytes = 2 * K * E_pad * 2          # 2 buffers x bf16
    if resident_w_bytes <= _RESIDENT_W_MAX:
        tn, resident = E_pad, True
    else:                                         # huge K*E fallback
        tn = 512 if E_pad % 512 == 0 else (256 if E_pad % 256 == 0 else 128)
        resident = False

    def footprint(t):
        return (2 * t * K * 2                     # lhs tile, bf16, 2 buffers
                + 2 * t * tn * out_itemsize       # out tile, 2 buffers
                + 2 * K * tn * 2                  # weight, 2 buffers
                + 2 * tn * 4)                     # bias

    tm = min(2048, M_pad)                         # M_pad is a multiple of 8
    while tm > 8 and footprint(tm) > _VMEM_BUDGET:
        tm = max(8, (tm // 2) // 8 * 8)
    return tm, tn, resident


@functools.partial(jax.jit, static_argnames=("patch_size", "out_dtype"))
def patch_embed(x, weight, bias, *, patch_size, out_dtype=None):
    """x: (B, C, H, W) NCHW.  weight: (E, C, ph, pw).  bias: (E,).

    Returns (B, num_patches, E) in `out_dtype` (default: x.dtype).
    Note: operands are fed to the MXU in bf16 with f32 accumulation (documented
    deviation from a pure-f32 Conv2d; standard for ViT patch embedding)."""
    ph, pw = patch_size
    B, C, H, W = x.shape
    E = weight.shape[0]
    nh, nw = H // ph, W // pw
    num_patches = nh * nw
    M = B * num_patches
    K = C * ph * pw
    out_dtype = x.dtype if out_dtype is None else jnp.dtype(out_dtype)
    out_itemsize = jnp.dtype(out_dtype).itemsize

    # --- glue: extract non-overlapping patches (one fusible HBM pass) ---
    # (B, C, nh, ph, nw, pw) -> (B, nh, nw, C, ph, pw) -> (M, K)
    # TODO(synk): fuse this patchify into the kernel (see header note).
    xp = x.reshape(B, C, nh, ph, nw, pw)
    xp = jnp.transpose(xp, (0, 2, 4, 1, 3, 5))
    xp = xp.reshape(M, K).astype(jnp.bfloat16)           # bf16 MXU feed

    w2d = weight.reshape(E, K).T.astype(jnp.bfloat16)    # (K, E)
    b2d = bias.astype(jnp.float32).reshape(1, E)

    # Pad M to a sublane multiple and E to a lane multiple (unmasked stores).
    # For standard ViT (E=768, even B) both are no-ops.
    M_pad = _round_up(M, 8)
    E_pad = _round_up(E, 128)
    if M_pad != M:
        xp = jnp.pad(xp, ((0, M_pad - M), (0, 0)))
    if E_pad != E:
        w2d = jnp.pad(w2d, ((0, 0), (0, E_pad - E)))
        b2d = jnp.pad(b2d, ((0, 0), (0, E_pad - E)))

    tm, tn, resident = _select_tiles(M_pad, K, E_pad, out_itemsize)
    n_m = pl.cdiv(M_pad, tm)

    if resident:
        # Common case: whole (K, E_pad) weight lives in VMEM; constant
        # index_map -> DMA'd exactly once for the whole grid.
        grid = (n_m,)
        in_specs = [
            pl.BlockSpec((tm, K), lambda i: (i, 0)),        # patch rows
            pl.BlockSpec((K, E_pad), lambda i: (0, 0)),     # resident weight
            pl.BlockSpec((1, E_pad), lambda i: (0, 0)),     # resident bias
        ]
        out_specs = pl.BlockSpec((tm, E_pad), lambda i: (i, 0))
        dims = ("parallel",)
        n_lhs_reads = 1
    else:
        # Very large K*E: tile E, but keep it as the OUTER grid axis so the
        # weight block index is constant across the inner M loop (E_pad/tn
        # weight loads total; xp is re-read E_pad/tn times instead — cheap).
        grid = (E_pad // tn, n_m)
        in_specs = [
            pl.BlockSpec((tm, K), lambda j, i: (i, 0)),
            pl.BlockSpec((K, tn), lambda j, i: (0, j)),
            pl.BlockSpec((1, tn), lambda j, i: (0, j)),
        ]
        out_specs = pl.BlockSpec((tm, tn), lambda j, i: (i, j))
        dims = ("parallel", "parallel")
        n_lhs_reads = E_pad // tn

    cost = pl.CostEstimate(
        flops=2 * M_pad * K * E_pad,
        transcendentals=0,
        bytes_accessed=(n_lhs_reads * M_pad * K * 2        # lhs reads (bf16)
                        + K * E_pad * 2                    # weight read once
                        + E_pad * 4                        # bias
                        + M_pad * E_pad * out_itemsize),   # output write
    )

    out = pl.pallas_call(
        _patch_embed_kernel,
        out_shape=jax.ShapeDtypeStruct((M_pad, E_pad), out_dtype),
        grid_spec=pltpu.PrefetchScalarGridSpec(
            num_scalar_prefetch=0,
            grid=grid,
            in_specs=in_specs,
            out_specs=out_specs,
        ),
        compiler_params=pltpu.CompilerParams(
            dimension_semantics=dims,
            vmem_limit_bytes=_VMEM_LIMIT,
        ),
        cost_estimate=cost,
    )(xp, w2d, b2d)

    # Strip padding only if it was applied (avoids an extra XLA copy otherwise).
    if M_pad != M or E_pad != E:
        out = out[:M, :E]
    return out.reshape(B, num_patches, E)


if __name__ == "__main__":
    # Small, self-consistent shapes: img 16x16, patch 4x4, 4 in-chans, 32 dim.
    B, C, H, W = 2, 4, 16, 16
    ph, pw = 4, 4
    E = 32

    key = jax.random.PRNGKey(0)
    kx, kw, kb = jax.random.split(key, 3)
    x = jax.random.normal(kx, (B, C, H, W), dtype=jnp.float32)
    weight = jax.random.normal(kw, (E, C, ph, pw), dtype=jnp.float32) * 0.02
    bias = jax.random.normal(kb, (E,), dtype=jnp.float32) * 0.02

    # Reference: nn.Conv2d(stride=kernel) semantics on bf16-quantized operands
    # with f32 accumulation (matches the kernel's MXU math).
    x_q = x.astype(jnp.bfloat16).astype(jnp.float32)
    w_q = weight.astype(jnp.bfloat16).astype(jnp.float32)
    ref = jax.lax.conv_general_dilated(
        x_q, w_q, window_strides=(ph, pw), padding="VALID",
        dimension_numbers=("NCHW", "OIHW", "NCHW"),
        preferred_element_type=jnp.float32,
    ) + bias.reshape(1, E, 1, 1)
    ref = jnp.transpose(ref.reshape(B, E, -1), (0, 2, 1))

    num_patches = (H // ph) * (W // pw)

    # 1) Module-faithful dtype (out_dtype=None -> x.dtype = f32).
    out_f32 = jax.block_until_ready(
        patch_embed(x, weight, bias, patch_size=(ph, pw)))
    assert out_f32.shape == (B, num_patches, E), out_f32.shape
    assert out_f32.dtype == x.dtype, out_f32.dtype
    err_f32 = float(jnp.max(jnp.abs(out_f32 - ref)))
    assert jnp.allclose(out_f32, ref, atol=1e-2, rtol=1e-2), err_f32

    # 2) Perf-recommended bf16 output (halves the dominant HBM write stream).
    out_bf16 = jax.block_until_ready(
        patch_embed(x, weight, bias, patch_size=(ph, pw),
                    out_dtype=jnp.bfloat16))
    assert out_bf16.shape == (B, num_patches, E), out_bf16.shape
    assert out_bf16.dtype == jnp.bfloat16, out_bf16.dtype
    err_bf16 = float(jnp.max(jnp.abs(out_bf16.astype(jnp.float32) - ref)))
    assert jnp.allclose(out_bf16.astype(jnp.float32), ref,
                        atol=2e-2, rtol=2e-2), err_bf16

    print("KERNEL_OK")
</pallas_src>

<mosaic_0001>
module attributes {stable_mosaic.version = 11 : i64} {
  func.func @_patch_embed_kernel(%arg0: i32, %arg1: memref<32x64xbf16, #tpu.memory_space<vmem>>, %arg2: memref<64x128xbf16, #tpu.memory_space<vmem>>, %arg3: memref<1x128xf32, #tpu.memory_space<vmem>>, %arg4: memref<32x128xf32, #tpu.memory_space<vmem>>) attributes {dimension_semantics = [#tpu.dimension_semantics<parallel>], iteration_bounds = array<i64: 1>, scalar_prefetch = 0 : i64, scratch_operands = 0 : i64, tpu.core_type = #tpu.core_type<tc>, window_params = [{transform_indices = @transform_0, window_bounds = array<i64: 32, 64>}, {pipeline_mode = #tpu.pipeline_mode<synchronous>, transform_indices = @transform_1, window_bounds = array<i64: 64, 128>}, {pipeline_mode = #tpu.pipeline_mode<synchronous>, transform_indices = @transform_2, window_bounds = array<i64: 1, 128>}, {transform_indices = @transform_3, window_bounds = array<i64: 32, 128>}]} {
    %c0 = arith.constant 0 : index
    %c0_0 = arith.constant 0 : index
    %0 = vector.load %arg1[%c0, %c0_0] : memref<32x64xbf16, #tpu.memory_space<vmem>>, vector<32x64xbf16>
    %c0_1 = arith.constant 0 : index
    %c0_2 = arith.constant 0 : index
    %1 = vector.load %arg2[%c0_1, %c0_2] : memref<64x128xbf16, #tpu.memory_space<vmem>>, vector<64x128xbf16>
    %cst = arith.constant dense<0.000000e+00> : vector<32x128xf32>
    %2 = tpu.matmul %0, %1, %cst {dimension_numbers = #tpu.dot_dimension_numbers<[1], [0], [0], [1], [0, 0, 1, 1], [], []>} : vector<32x64xbf16>, vector<64x128xbf16>, vector<32x128xf32> -> vector<32x128xf32>
    %c0_3 = arith.constant 0 : index
    %c0_4 = arith.constant 0 : index
    %3 = vector.load %arg3[%c0_3, %c0_4] : memref<1x128xf32, #tpu.memory_space<vmem>>, vector<1x128xf32>
    %4 = vector.broadcast %3 : vector<1x128xf32> to vector<32x128xf32>
    %5 = arith.addf %2, %4 : vector<32x128xf32>
    %c0_5 = arith.constant 0 : index
    %c0_6 = arith.constant 0 : index
    %6 = vector.load %arg4[%c0_5, %c0_6] : memref<32x128xf32, #tpu.memory_space<vmem>>, vector<32x128xf32>
    tpu.vector_store %arg4[%c0_5, %c0_6], %5 {strides = array<i32>} : memref<32x128xf32, #tpu.memory_space<vmem>>, vector<32x128xf32>,
    return
  }
  func.func @transform_0(%arg0: i32) -> (i32, i32) {
    %c0_i32 = arith.constant 0 : i32
    %c0_i32_0 = arith.constant 0 : i32
    return %arg0, %c0_i32 : i32, i32
  }
  func.func @transform_1(%arg0: i32) -> (i32, i32) {
    %c0_i32 = arith.constant 0 : i32
    %c0_i32_0 = arith.constant 0 : i32
    %c0_i32_1 = arith.constant 0 : i32
    return %c0_i32, %c0_i32_0 : i32, i32
  }
  func.func @transform_2(%arg0: i32) -> (i32, i32) {
    %c0_i32 = arith.constant 0 : i32
    %c0_i32_0 = arith.constant 0 : i32
    %c0_i32_1 = arith.constant 0 : i32
    return %c0_i32, %c0_i32_0 : i32, i32
  }
  func.func @transform_3(%arg0: i32) -> (i32, i32) {
    %c0_i32 = arith.constant 0 : i32
    %c0_i32_0 = arith.constant 0 : i32
    return %arg0, %c0_i32 : i32, i32
  }
}

</mosaic_0001>

<llo_original>
// kernel: patch_embed.1
$region0: #{patch_embed.1}
  #allocation0 [shape = 'u32[]', space=smem, size = 0x4, offset = 0x4, fixed_abs, tag = 'smem constant byte address 0x4 - core index']
  #allocation1 [shape = 'u32[144,128]{1,0:T(1,128)}', space=vmem, size = 0x12000, scoped, tag = 'internal scratch']
  %s0 = inlined_call_operand.vmem [shape: bf16[32,64], index: 0, kind: input, shape index: {}]
  %s1 = inlined_call_operand.vmem [shape: bf16[64,128], index: 1, kind: input, shape index: {}]
  %s2 = inlined_call_operand.vmem [shape: f32[1,128], index: 2, kind: input, shape index: {}]
  %s3 = inlined_call_operand.hbm [shape: f32[32,128], index: 3, kind: output, shape index: {}]
  %s4 = sld [smem:[#allocation0]]
  $region22: #{patch_embed.1} parent=0
    _
  %s6 = ssub.s32 1, %s4
  %s7 = scalar_select 0, %s6, %s4
  $region1: #{patch_embed.1} parent=0
    #allocation2 [shape = 'u8[16384]{0}', space=vmem, size = 0x4000, scoped, tag = 'output window, operand 0, single buffered']
    #allocation3 [shape = 's32[1]{0}', space=sflag, size = 0x4, scoped, tag = 'scoped memory for patch_embed.1']
    %8 = vsyncpa [#allocation3], 0
    // Predicated region
    $region2: #{patch_embed.1} parent=1 // pred_check
      _
    $region3: #{patch_embed.1} parent=1 // pred_check_branch
      %10 = sbr.rel (0) target = $region5
    $region4: #{patch_embed.1} parent=1 // pred_region
      _
    $region5: #{patch_embed.1} parent=1 // pred_fallthru
      _
    // Predicated region
    $region6: #{patch_embed.1} parent=1 // pred_check
      _
    $region7: #{patch_embed.1} parent=1 // pred_check_branch
      %12 = sbr.rel (0) target = $region9
    $region8: #{patch_embed.1} parent=1 // pred_region
      _
    $region9: #{patch_embed.1} parent=1 // pred_fallthru
      _
    // Predicated region
    $region10: #{patch_embed.1} parent=1 // pred_check
      _
    $region11: #{patch_embed.1} parent=1 // pred_check_branch
      %14 = sbr.rel (0) target = $region13
    $region12: #{patch_embed.1} parent=1 // pred_region
      _
    $region13: #{patch_embed.1} parent=1 // pred_fallthru
      _
    %v16 = vld [vmem:[%s0] sm:$0xf]
    %v17 = vld [vmem:[%s0 + $0x4] sm:$0xf]
    %v18 = vld [vmem:[%s0 + $0x8] sm:$0xf]
    %v19 = vld [vmem:[%s0 + $0xc] sm:$0xf]
    %v20 = vld [vmem:[%s1] sm:$0xf]
    %v21 = vld [vmem:[%s1 + $0x4] sm:$0xf]
    %v22 = vld [vmem:[%s1 + $0x8] sm:$0xf]
    %v23 = vld [vmem:[%s1 + $0xc] sm:$0xf]
    %v24 = vld [vmem:[%s1 + $0x10] sm:$0xf]
    %v25 = vld [vmem:[%s1 + $0x14] sm:$0xf]
    %v26 = vld [vmem:[%s1 + $0x18] sm:$0xf]
    %v27 = vld [vmem:[%s1 + $0x1c] sm:$0xf]
    %v28 = vld [vmem:[%s2] sm:$0x1]
    %v30 = vlaneseq
    %v31 = vshrl.u32 %v30, 7
    %v32 = vsub.s32 0, %v31
    %v33 = vrot.slane %v28, %v32
    %v39 = vunpack.c.l.b16 %v16
    %v40 = vunpack.c.l.b16 %v17
    %v41 = vunpack.c.l.b16 %v18
    %v42 = vunpack.c.l.b16 %v19
    %v43 = vpack.c.b16 %v40, %v39
    %v44 = vpack.c.b16 %v42, %v41
    %v53 = vunpack.c.l.b16 %v20
    %v54 = vunpack.c.l.b16 %v21
    %v55 = vunpack.c.l.b16 %v22
    %v56 = vunpack.c.l.b16 %v23
    %v57 = vunpack.c.l.b16 %v24
    %v58 = vunpack.c.l.b16 %v25
    %v59 = vunpack.c.l.b16 %v26
    %v60 = vunpack.c.l.b16 %v27
    %v61 = vpack.c.b16 %v54, %v53
    %v62 = vpack.c.b16 %v56, %v55
    %v63 = vpack.c.b16 %v58, %v57
    %v64 = vpack.c.b16 %v60, %v59
    %vm69 = vcmask 523264
    %v71 = vsel %vm69, %v43, 0
    %v74 = vsel %vm69, %v44, 0
    %76 = vmatprep.subr.bf16.mxu0 0
    %77 = vmatpush1.bf16.msra.mxu0 %v61
    %78 = vmatprep.subr.bf16.mxu0 0
    %79 = vmatpush1.bf16.msra.mxu0 %v62
    %80 = vmatprep.subr.bf16.mxu0 0
    %81 = vmatpush1.bf16.msra.mxu0 %v63
    %82 = vmatprep.subr.bf16.mxu0 0
    %83 = vmatpush1.bf16.msra.mxu0 %v64
    %84 = vmatprep.subr.bf16.mxu0 0
    %85 = vmatpush1.bf16.msra.mxu0 0
    %86 = vmatprep.subr.bf16.mxu0 0
    %87 = vmatpush1.bf16.msra.mxu0 0
    %88 = vmatprep.subr.bf16.mxu0 0
    %89 = vmatpush1.bf16.msra.mxu0 0
    %90 = vmatprep.subr.bf16.mxu0 0
    %91 = vmatpush1.bf16.msra.mxu0 0
    %92 = vmatprep.subr.bf16.mxu0 0
    %93 = vmatpush1.bf16.msra.mxu0 0
    %94 = vmatprep.subr.bf16.mxu0 0
    %95 = vmatpush1.bf16.msra.mxu0 0
    %96 = vmatprep.subr.bf16.mxu0 0
    %97 = vmatpush1.bf16.msra.mxu0 0
    %98 = vmatprep.subr.bf16.mxu0 0
    %99 = vmatpush1.bf16.msra.mxu0 0
    %100 = vmatprep.subr.bf16.mxu0 0
    %101 = vmatpush1.bf16.msra.mxu0 0
    %102 = vmatprep.subr.bf16.mxu0 0
    %103 = vmatpush1.bf16.msra.mxu0 0
    %104 = vmatprep.subr.bf16.mxu0 0
    %105 = vmatpush1.bf16.msra.mxu0 0
    %106 = vmatprep.subr.bf16.mxu0 0
    %107 = vmatpush1.bf16.msra.mxu0 0
    %108 = vmatprep.mubr.bf16.mxu0 0
    %109 = vmatmul.mubr.bf16.gmra.mrb[0].mxu0 %v71
    %v110 = vpop.f32.mrb[0].mxu0
    %v111 = vadd.f32 %v33, %v110
    %v112 = vpop.f32.mrb[0].mxu0
    %v113 = vpop.f32.mrb[0].mxu0
    %v114 = vadd.f32 %v33, %v113
    %v115 = vpop.f32.mrb[0].mxu0
    %116 = vmatprep.mubr.bf16.mxu0 0
    %117 = vmatmul.mubr.bf16.gmra.mrb[0].mxu0 %v74
    %v118 = vpop.f32.mrb[0].mxu0
    %v119 = vadd.f32 %v33, %v118
    %v120 = vpop.f32.mrb[0].mxu0
    %v121 = vpop.f32.mrb[0].mxu0
    %v122 = vadd.f32 %v33, %v121
    %v123 = vpop.f32.mrb[0].mxu0
    %124 = vdwg.mxu0
    %125 = vst [vmem:[#allocation2] sm:$0xff] %v111
    %126 = vst [vmem:[#allocation2 + $0x8] sm:$0xff] %v114
    %127 = vst [vmem:[#allocation2 + $0x10] sm:$0xff] %v119
    %128 = vst [vmem:[#allocation2 + $0x18] sm:$0xff] %v122
    // Predicated region
    $region14: #{patch_embed.1} parent=1 // pred_check
      _
    $region15: #{patch_embed.1} parent=1 // pred_check_branch
      %130 = sbr.rel (0) target = $region17
    $region16: #{patch_embed.1} parent=1 // pred_region
      %s132 = ssub.s32 512, 512
      %133 = vsyncadd [#allocation3], %s132
      %s134 = sshll.u32 [#allocation2], 4
      %s135 = int_to_ptr.vmem [resolvable:$true] %s134
      %140 = dma.vmem_to_hbm [thread:$0]  %s135, 512, %s3, [#allocation3], 128, 128, 8
    $region17: #{patch_embed.1} parent=1 // pred_fallthru
      _
    // Predicated region
    $region18: #{patch_embed.1} parent=1 // pred_check
      _
    $region19: #{patch_embed.1} parent=1 // pred_check_branch
      %142 = sbr.rel (0) target = $region21
    $region20: #{patch_embed.1} parent=1 // pred_region
      %143 = dma.done [#allocation3], 512
    $region21: #{patch_embed.1} parent=1 // pred_fallthru
      _
    %144 = vsyncpa [#allocation3], 1

</llo_original>
